<compile_context>
chip_gen: v5e
topology: v5e:2x2
jax: 0.10.0
libtpu: 0.0.40
codegen_flags: <defaults>
</compile_context>

<pallas_src>
import functools

import jax
import jax.numpy as jnp
from jax import lax
from jax.experimental import pallas as pl
from jax.experimental.pallas import tpu as pltpu

_LANE = 128


def _round_up(n, m):
    return ((n + m - 1) // m) * m


def _mlp_kernel(num_hidden, use_fori, x_ref, w_in_ref, *rest):
    # rest layout: [w_hid_ref (only if num_hidden > 0)], w_out_ref, b_hid_ref, b_out_ref, out_ref
    if num_hidden > 0:
        w_hid_ref, w_out_ref, b_hid_ref, b_out_ref, out_ref = rest
    else:
        w_out_ref, b_hid_ref, b_out_ref, out_ref = rest
        w_hid_ref = None

    cdt = w_in_ref.dtype  # MXU operand dtype (f32 default; bf16 optional)

    # Input layer: x @ W_in + b0, ReLU.  Accumulate in f32 on the MXU.
    h = jnp.dot(x_ref[...].astype(cdt), w_in_ref[...],
                preferred_element_type=jnp.float32)
    h = jnp.maximum(h + b_hid_ref[0], 0.0)          # b_hid_ref[l] -> (1, hid_pad), 2-D broadcast

    # Hidden layers.
    if num_hidden > 0:
        if use_fori:
            # Deep nets: fori_loop keeps code size / vreg live ranges bounded.
            def body(l, h):
                w = w_hid_ref[l]                    # (hid_pad, hid_pad), leading-axis dyn index
                b = b_hid_ref[l + 1]                # (1, hid_pad)
                h = jnp.dot(h.astype(cdt), w, preferred_element_type=jnp.float32)
                return jnp.maximum(h + b, 0.0)
            h = lax.fori_loop(0, num_hidden, body, h)
        else:
            for l in range(num_hidden):             # shallow nets: static unroll
                h = jnp.dot(h.astype(cdt), w_hid_ref[l],
                            preferred_element_type=jnp.float32)
                h = jnp.maximum(h + b_hid_ref[l + 1], 0.0)

    # Output layer (no activation).  out_dim stays unpadded: full-dim (masked) store is
    # cheaper than inflating HBM write bytes 32x for a 4-wide head.
    y = jnp.dot(h.astype(cdt), w_out_ref[...], preferred_element_type=jnp.float32)
    out_ref[...] = (y + b_out_ref[...]).astype(out_ref.dtype)


def prepare_params(params, *, compute_dtype=jnp.float32, lane_align=_LANE):
    """One-time packing of DQM_model params (hoisted out of the hot forward path).

    params: list of (W, b); W shaped [in, out] (transposed vs. PyTorch), b [out] or [1, out];
            order: input layer, hidden layers..., output layer.
    lane_align: 128 everywhere; use 256 on v6e/v7x when hidden_dim >= 256 to fill the
                256x256 MXU.
    """
    num_layers = len(params)
    num_hidden = num_layers - 2
    in_dim = params[0][0].shape[0]
    hidden_dim = params[0][0].shape[1]
    out_dim = params[-1][0].shape[1]

    # Only the internal hidden width gets padded (weights are resident + packed once);
    # the streamed dims (in_dim of x, out_dim of y) stay unpadded.
    hid_pad = _round_up(hidden_dim, lane_align)
    compute_dtype = jnp.dtype(compute_dtype)

    def pad_w(W, rows, cols):
        W = jnp.asarray(W, compute_dtype)
        r, c = W.shape
        if (r, c) == (rows, cols):
            return W
        return jnp.zeros((rows, cols), compute_dtype).at[:r, :c].set(W)

    w_in = pad_w(params[0][0], in_dim, hid_pad)                 # (in_dim, hid_pad)
    w_hid = None
    if num_hidden > 0:
        w_hid = jnp.stack([pad_w(params[1 + l][0], hid_pad, hid_pad)
                           for l in range(num_hidden)])         # (num_hidden, hid_pad, hid_pad)
    w_out = pad_w(params[-1][0], hid_pad, out_dim)              # (hid_pad, out_dim)

    # Input + hidden biases share width hid_pad -> one stacked f32 array (single DMA).
    # Shape (L, 1, hid_pad) so per-layer reads are 2-D (1, hid_pad) via leading-axis index.
    b_rows = []
    for (_, b) in params[:-1]:
        b_flat = jnp.ravel(jnp.asarray(b, jnp.float32))
        b_rows.append(jnp.zeros((hid_pad,), jnp.float32).at[:b_flat.shape[0]].set(b_flat))
    b_hid = jnp.stack(b_rows)[:, None, :]                       # (num_hidden + 1, 1, hid_pad)
    b_out = jnp.ravel(jnp.asarray(params[-1][1], jnp.float32)).reshape(1, out_dim)

    return dict(w_in=w_in, w_hid=w_hid, w_out=w_out, b_hid=b_hid, b_out=b_out,
                dims=(in_dim, hidden_dim, hid_pad, out_dim, num_hidden),
                compute_dtype=compute_dtype)


def dqm_forward(x, packed, *, max_tile_b=512, single_buffer_weights=False,
                vmem_limit_bytes=None):
    """Hot-path forward pass. `packed` comes from prepare_params()."""
    in_dim, _hidden_dim, hid_pad, out_dim, num_hidden = packed["dims"]
    compute_dtype = packed["compute_dtype"]
    batch = x.shape[0]
    assert x.shape[1] == in_dim

    # Sub-32-bit operand dtypes pack along sublanes: bf16 rows align to 16, 8-bit to 32.
    row_align = max(8, 32 // compute_dtype.itemsize)

    # One big batch tile: single grid step for small batches, capped tiles for big ones.
    tile_b = min(_round_up(batch, row_align), _round_up(max_tile_b, row_align))
    batch_pad = _round_up(batch, tile_b)
    grid_b = batch_pad // tile_b
    # TODO(synk): on v7x (2 TensorCores) prefer an even grid_b >= 2 for large batches.

    x_in = jnp.asarray(x, compute_dtype)
    if batch_pad != batch:
        x_in = jnp.pad(x_in, ((0, batch_pad - batch), (0, 0)))

    # --- BlockSpecs: stream x / y over the batch grid with UNPADDED feature widths;
    # weights & biases are grid-invariant (index_map -> zeros) and stay VMEM-resident.
    def resident(shape):
        idx = lambda i, _n=len(shape): (0,) * _n
        if single_buffer_weights:
            # Constant index_map => no double buffer needed; halves resident-weight VMEM
            # (matters on v7x's 64 MiB for large hidden stacks).
            return pl.BlockSpec(shape, idx, pipeline_mode=pl.Buffered(1))
        return pl.BlockSpec(shape, idx)

    in_specs = [pl.BlockSpec((tile_b, in_dim), lambda i: (i, 0)),
                resident((in_dim, hid_pad))]
    args = [x_in, packed["w_in"]]
    if num_hidden > 0:
        in_specs.append(resident((num_hidden, hid_pad, hid_pad)))
        args.append(packed["w_hid"])
    in_specs += [resident((hid_pad, out_dim)),
                 resident((num_hidden + 1, 1, hid_pad)),
                 resident((1, out_dim))]
    args += [packed["w_out"], packed["b_hid"], packed["b_out"]]

    # --- cost estimate + explicit VMEM budget ------------------------------------------
    flops = 2 * batch_pad * (in_dim * hid_pad + num_hidden * hid_pad * hid_pad
                             + hid_pad * out_dim)
    w_bytes = (in_dim * hid_pad + num_hidden * hid_pad * hid_pad
               + hid_pad * out_dim) * compute_dtype.itemsize
    b_bytes = ((num_hidden + 1) * hid_pad + out_dim) * 4
    io_bytes = batch_pad * (in_dim * compute_dtype.itemsize + out_dim * 4)
    cost = pl.CostEstimate(flops=flops, transcendentals=0,
                           bytes_accessed=w_bytes + b_bytes + io_bytes)

    if vmem_limit_bytes is None:
        wbuf = 1 if single_buffer_weights else 2
        tile_io = 2 * tile_b * (in_dim * compute_dtype.itemsize + out_dim * 4)
        act_bytes = 4 * tile_b * hid_pad * 4               # f32 intermediate head-room
        vmem_limit_bytes = int(min(max((w_bytes + b_bytes) * wbuf + tile_io + act_bytes
                                       + (4 << 20), 32 << 20), 64 << 20))

    use_fori = num_hidden >= 4      # static unroll for shallow nets, fori_loop for deep
    kernel = functools.partial(_mlp_kernel, num_hidden, use_fori)

    y = pl.pallas_call(
        kernel,
        out_shape=jax.ShapeDtypeStruct((batch_pad, out_dim), jnp.float32),
        grid=(grid_b,),
        in_specs=in_specs,
        out_specs=pl.BlockSpec((tile_b, out_dim), lambda i: (i, 0)),
        compiler_params=pltpu.CompilerParams(
            dimension_semantics=("parallel",),
            vmem_limit_bytes=vmem_limit_bytes,
        ),
        cost_estimate=cost,
    )(*args)

    return y[:batch] if batch_pad != batch else y


def init_params(key, input_dim, hidden_dim, output_dim, depth=2):
    """Deterministic init mimicking torch.nn.Linear (uniform +/- 1/sqrt(fan_in)).
    Weights stored [in, out] (transposed vs. PyTorch)."""
    dims = [(input_dim, hidden_dim)]
    dims += [(hidden_dim, hidden_dim)] * (depth - 1)
    dims += [(hidden_dim, output_dim)]

    params = []
    for (fan_in, fan_out) in dims:
        key, kw, kb = jax.random.split(key, 3)
        bound = 1.0 / jnp.sqrt(jnp.float32(fan_in))
        W = jax.random.uniform(kw, (fan_in, fan_out), jnp.float32, -bound, bound)
        b = jax.random.uniform(kb, (1, fan_out), jnp.float32, -bound, bound)
        params.append((W, b))
    return params


def reference_forward(x, params):
    h = x
    for (W, b) in params[:-1]:
        h = jnp.maximum(jnp.dot(h, W, precision=lax.Precision.HIGHEST) + b, 0.0)
    W, b = params[-1]
    return jnp.dot(h, W, precision=lax.Precision.HIGHEST) + b


if __name__ == "__main__":
    key = jax.random.PRNGKey(0)

    # DQN-like shapes: state_dim=16, hidden=32, actions=4, depth=2.
    batch, input_dim, hidden_dim, output_dim, depth = 64, 16, 32, 4, 2

    key, kx = jax.random.split(key)
    x = jax.random.normal(kx, (batch, input_dim), jnp.float32)

    key, kp = jax.random.split(key)
    params = init_params(kp, input_dim, hidden_dim, output_dim, depth=depth)

    # One-time packing, then the hot forward (single grid step for batch=64).
    packed = prepare_params(params)
    y = jax.block_until_ready(dqm_forward(x, packed))
    y_ref = reference_forward(x, params)
    assert y.shape == (batch, output_dim)
    assert jnp.allclose(y, y_ref, atol=1e-4, rtol=1e-4), "mismatch (shallow, single tile)"

    # Multi-step streaming path (batch grid > 1).
    y_s = jax.block_until_ready(dqm_forward(x, packed, max_tile_b=16))
    assert jnp.allclose(y_s, y_ref, atol=1e-4, rtol=1e-4), "mismatch (streamed tiles)"

    # Deeper net + odd batch: exercises the fori_loop hidden path and batch-row padding.
    key, kp2, kx2 = jax.random.split(key, 3)
    params_d = init_params(kp2, input_dim, hidden_dim, output_dim, depth=6)
    x2 = jax.random.normal(kx2, (37, input_dim), jnp.float32)
    packed_d = prepare_params(params_d)
    y2 = jax.block_until_ready(dqm_forward(x2, packed_d))
    y2_ref = reference_forward(x2, params_d)
    assert y2.shape == (37, output_dim)
    assert jnp.allclose(y2, y2_ref, atol=1e-4, rtol=1e-4), "mismatch (deep / fori path)"

    print("KERNEL_OK")
</pallas_src>

<mosaic_0001>
module attributes {stable_mosaic.version = 11 : i64} {
  func.func @_mlp_kernel(%arg0: i32, %arg1: memref<64x16xf32, #tpu.memory_space<vmem>>, %arg2: memref<16x128xf32, #tpu.memory_space<vmem>>, %arg3: memref<1x128x128xf32, #tpu.memory_space<vmem>>, %arg4: memref<128x4xf32, #tpu.memory_space<vmem>>, %arg5: memref<2x1x128xf32, #tpu.memory_space<vmem>>, %arg6: memref<1x4xf32, #tpu.memory_space<vmem>>, %arg7: memref<64x4xf32, #tpu.memory_space<vmem>>) attributes {dimension_semantics = [#tpu.dimension_semantics<parallel>], iteration_bounds = array<i64: 1>, scalar_prefetch = 0 : i64, scratch_operands = 0 : i64, tpu.core_type = #tpu.core_type<tc>, window_params = [{transform_indices = @transform_0, window_bounds = array<i64: 64, 16>}, {pipeline_mode = #tpu.pipeline_mode<synchronous>, transform_indices = @transform_1, window_bounds = array<i64: 16, 128>}, {pipeline_mode = #tpu.pipeline_mode<synchronous>, transform_indices = @transform_2, window_bounds = array<i64: 1, 128, 128>}, {pipeline_mode = #tpu.pipeline_mode<synchronous>, transform_indices = @transform_3, window_bounds = array<i64: 128, 4>}, {pipeline_mode = #tpu.pipeline_mode<synchronous>, transform_indices = @transform_4, window_bounds = array<i64: 2, 1, 128>}, {pipeline_mode = #tpu.pipeline_mode<synchronous>, transform_indices = @transform_5, window_bounds = array<i64: 1, 4>}, {transform_indices = @transform_6, window_bounds = array<i64: 64, 4>}]} {
    %c0 = arith.constant 0 : index
    %c0_0 = arith.constant 0 : index
    %0 = vector.load %arg1[%c0, %c0_0] : memref<64x16xf32, #tpu.memory_space<vmem>>, vector<64x16xf32>
    %c0_1 = arith.constant 0 : index
    %c0_2 = arith.constant 0 : index
    %1 = vector.load %arg2[%c0_1, %c0_2] : memref<16x128xf32, #tpu.memory_space<vmem>>, vector<16x128xf32>
    %cst = arith.constant dense<0.000000e+00> : vector<64x128xf32>
    %2 = tpu.matmul %0, %1, %cst {dimension_numbers = #tpu.dot_dimension_numbers<[1], [0], [0], [1], [0, 0, 1, 1], [], []>} : vector<64x16xf32>, vector<16x128xf32>, vector<64x128xf32> -> vector<64x128xf32>
    %c0_3 = arith.constant 0 : index
    %c0_4 = arith.constant 0 : index
    %c0_5 = arith.constant 0 : index
    %3 = vector.load %arg5[%c0_3, %c0_4, %c0_5] : memref<2x1x128xf32, #tpu.memory_space<vmem>>, vector<1x1x128xf32>
    %4 = vector.shape_cast %3 : vector<1x1x128xf32> to vector<1x128xf32>
    %5 = vector.broadcast %4 : vector<1x128xf32> to vector<64x128xf32>
    %6 = arith.addf %2, %5 : vector<64x128xf32>
    %cst_6 = arith.constant 0.000000e+00 : f32
    %7 = vector.broadcast %cst_6 : f32 to vector<64x128xf32>
    %8 = arith.maximumf %6, %7 : vector<64x128xf32>
    %c0_7 = arith.constant 0 : index
    %c0_8 = arith.constant 0 : index
    %c0_9 = arith.constant 0 : index
    %9 = vector.load %arg3[%c0_7, %c0_8, %c0_9] : memref<1x128x128xf32, #tpu.memory_space<vmem>>, vector<1x128x128xf32>
    %10 = vector.shape_cast %9 : vector<1x128x128xf32> to vector<128x128xf32>
    %cst_10 = arith.constant dense<0.000000e+00> : vector<64x128xf32>
    %11 = tpu.matmul %8, %10, %cst_10 {dimension_numbers = #tpu.dot_dimension_numbers<[1], [0], [0], [1], [0, 0, 1, 1], [], []>} : vector<64x128xf32>, vector<128x128xf32>, vector<64x128xf32> -> vector<64x128xf32>
    %c1 = arith.constant 1 : index
    %c0_11 = arith.constant 0 : index
    %c0_12 = arith.constant 0 : index
    %12 = vector.load %arg5[%c1, %c0_11, %c0_12] : memref<2x1x128xf32, #tpu.memory_space<vmem>>, vector<1x1x128xf32>
    %13 = vector.shape_cast %12 : vector<1x1x128xf32> to vector<1x128xf32>
    %14 = vector.broadcast %13 : vector<1x128xf32> to vector<64x128xf32>
    %15 = arith.addf %11, %14 : vector<64x128xf32>
    %cst_13 = arith.constant 0.000000e+00 : f32
    %16 = vector.broadcast %cst_13 : f32 to vector<64x128xf32>
    %17 = arith.maximumf %15, %16 : vector<64x128xf32>
    %c0_14 = arith.constant 0 : index
    %c0_15 = arith.constant 0 : index
    %18 = vector.load %arg4[%c0_14, %c0_15] : memref<128x4xf32, #tpu.memory_space<vmem>>, vector<128x4xf32>
    %cst_16 = arith.constant dense<0.000000e+00> : vector<64x4xf32>
    %19 = tpu.matmul %17, %18, %cst_16 {dimension_numbers = #tpu.dot_dimension_numbers<[1], [0], [0], [1], [0, 0, 1, 1], [], []>} : vector<64x128xf32>, vector<128x4xf32>, vector<64x4xf32> -> vector<64x4xf32>
    %c0_17 = arith.constant 0 : index
    %c0_18 = arith.constant 0 : index
    %20 = vector.load %arg6[%c0_17, %c0_18] : memref<1x4xf32, #tpu.memory_space<vmem>>, vector<1x4xf32>
    %21 = vector.broadcast %20 : vector<1x4xf32> to vector<64x4xf32>
    %22 = arith.addf %19, %21 : vector<64x4xf32>
    %c0_19 = arith.constant 0 : index
    %c0_20 = arith.constant 0 : index
    %23 = vector.load %arg7[%c0_19, %c0_20] : memref<64x4xf32, #tpu.memory_space<vmem>>, vector<64x4xf32>
    tpu.vector_store %arg7[%c0_19, %c0_20], %22 {strides = array<i32>} : memref<64x4xf32, #tpu.memory_space<vmem>>, vector<64x4xf32>,
    return
  }
  func.func @transform_0(%arg0: i32) -> (i32, i32) {
    %c0_i32 = arith.constant 0 : i32
    %c0_i32_0 = arith.constant 0 : i32
    return %arg0, %c0_i32 : i32, i32
  }
  func.func @transform_1(%arg0: i32) -> (i32, i32) {
    %c0_i32 = arith.constant 0 : i32
    %c0_i32_0 = arith.constant 0 : i32
    %c0_i32_1 = arith.constant 0 : i32
    return %c0_i32, %c0_i32_0 : i32, i32
  }
  func.func @transform_2(%arg0: i32) -> (i32, i32, i32) {
    %c0_i32 = arith.constant 0 : i32
    %c0_i32_0 = arith.constant 0 : i32
    %c0_i32_1 = arith.constant 0 : i32
    %c0_i32_2 = arith.constant 0 : i32
    return %c0_i32, %c0_i32_0, %c0_i32_1 : i32, i32, i32
  }
  func.func @transform_3(%arg0: i32) -> (i32, i32) {
    %c0_i32 = arith.constant 0 : i32
    %c0_i32_0 = arith.constant 0 : i32
    %c0_i32_1 = arith.constant 0 : i32
    return %c0_i32, %c0_i32_0 : i32, i32
  }
  func.func @transform_4(%arg0: i32) -> (i32, i32, i32) {
    %c0_i32 = arith.constant 0 : i32
    %c0_i32_0 = arith.constant 0 : i32
    %c0_i32_1 = arith.constant 0 : i32
    %c0_i32_2 = arith.constant 0 : i32
    return %c0_i32, %c0_i32_0, %c0_i32_1 : i32, i32, i32
  }
  func.func @transform_5(%arg0: i32) -> (i32, i32) {
    %c0_i32 = arith.constant 0 : i32
    %c0_i32_0 = arith.constant 0 : i32
    %c0_i32_1 = arith.constant 0 : i32
    return %c0_i32, %c0_i32_0 : i32, i32
  }
  func.func @transform_6(%arg0: i32) -> (i32, i32) {
    %c0_i32 = arith.constant 0 : i32
    %c0_i32_0 = arith.constant 0 : i32
    return %arg0, %c0_i32 : i32, i32
  }
}

</mosaic_0001>

<llo_original>
// kernel: tpu_custom_call.1
$region0: #{tpu_custom_call.1}
  #allocation0 [shape = 'u32[]', space=smem, size = 0x4, offset = 0x4, fixed_abs, tag = 'smem constant byte address 0x4 - core index']
  #allocation1 [shape = 'u32[72,128]{1,0:T(1,128)}', space=vmem, size = 0x9000, scoped, tag = 'internal scratch']
  %s0 = inlined_call_operand.vmem [shape: f32[64,16], index: 0, kind: input, shape index: {}]
  %s1 = inlined_call_operand.vmem [shape: f32[16,128], index: 1, kind: input, shape index: {}]
  %s2 = inlined_call_operand.vmem [shape: f32[1,128,128], index: 2, kind: input, shape index: {}]
  %s3 = inlined_call_operand.vmem [shape: f32[128,4], index: 3, kind: input, shape index: {}]
  %s4 = inlined_call_operand.vmem [shape: f32[2,1,128], index: 4, kind: input, shape index: {}]
  %s5 = inlined_call_operand.vmem [shape: f32[1,4], index: 5, kind: input, shape index: {}]
  %s6 = inlined_call_operand.vmem [shape: f32[64,4], index: 6, kind: output, shape index: {}]
  %s7 = sld [smem:[#allocation0]]
  $region34: #{tpu_custom_call.1} parent=0
    _
  %s9 = ssub.s32 1, %s7
  %s10 = scalar_select 0, %s9, %s7
  // Predicated region
  $region2: #{tpu_custom_call.1} parent=0 // pred_check
    _
  $region3: #{tpu_custom_call.1} parent=0 // pred_check_branch
    %12 = sbr.rel (0) target = $region5
  $region4: #{tpu_custom_call.1} parent=0 // pred_region
    _
  $region5: #{tpu_custom_call.1} parent=0 // pred_fallthru
    _
  // Predicated region
  $region6: #{tpu_custom_call.1} parent=0 // pred_check
    _
  $region7: #{tpu_custom_call.1} parent=0 // pred_check_branch
    %14 = sbr.rel (0) target = $region9
  $region8: #{tpu_custom_call.1} parent=0 // pred_region
    _
  $region9: #{tpu_custom_call.1} parent=0 // pred_fallthru
    _
  // Predicated region
  $region10: #{tpu_custom_call.1} parent=0 // pred_check
    _
  $region11: #{tpu_custom_call.1} parent=0 // pred_check_branch
    %16 = sbr.rel (0) target = $region13
  $region12: #{tpu_custom_call.1} parent=0 // pred_region
    _
  $region13: #{tpu_custom_call.1} parent=0 // pred_fallthru
    _
  // Predicated region
  $region14: #{tpu_custom_call.1} parent=0 // pred_check
    _
  $region15: #{tpu_custom_call.1} parent=0 // pred_check_branch
    %18 = sbr.rel (0) target = $region17
  $region16: #{tpu_custom_call.1} parent=0 // pred_region
    _
  $region17: #{tpu_custom_call.1} parent=0 // pred_fallthru
    _
  // Predicated region
  $region18: #{tpu_custom_call.1} parent=0 // pred_check
    _
  $region19: #{tpu_custom_call.1} parent=0 // pred_check_branch
    %20 = sbr.rel (0) target = $region21
  $region20: #{tpu_custom_call.1} parent=0 // pred_region
    _
  $region21: #{tpu_custom_call.1} parent=0 // pred_fallthru
    _
  // Predicated region
  $region22: #{tpu_custom_call.1} parent=0 // pred_check
    _
  $region23: #{tpu_custom_call.1} parent=0 // pred_check_branch
    %22 = sbr.rel (0) target = $region25
  $region24: #{tpu_custom_call.1} parent=0 // pred_region
    _
  $region25: #{tpu_custom_call.1} parent=0 // pred_fallthru
    _
  %v23 = vld [vmem:[%s0] sm:$0xff]
  %v24 = vld [vmem:[%s0 + $0x8] sm:$0xff]
  %v25 = vld [vmem:[%s0 + $0x10] sm:$0xff]
  %v26 = vld [vmem:[%s0 + $0x18] sm:$0xff]
  %v27 = vld [vmem:[%s0 + $0x20] sm:$0xff]
  %v28 = vld [vmem:[%s0 + $0x28] sm:$0xff]
  %v29 = vld [vmem:[%s0 + $0x30] sm:$0xff]
  %v30 = vld [vmem:[%s0 + $0x38] sm:$0xff]
  %v31 = vld [vmem:[%s1] sm:$0xff]
  %v32 = vld [vmem:[%s1 + $0x8] sm:$0xff]
  %v33 = vld [vmem:[%s4] sm:$0x1]
  %v35 = vperm.slane %v33, 0
  %vm37 = vcmask 130048
  %v39 = vsel %vm37, %v23, 0
  %v42 = vsel %vm37, %v24, 0
  %v45 = vsel %vm37, %v25, 0
  %v48 = vsel %vm37, %v26, 0
  %v51 = vsel %vm37, %v27, 0
  %v54 = vsel %vm37, %v28, 0
  %v57 = vsel %vm37, %v29, 0
  %v60 = vsel %vm37, %v30, 0
  %62 = vmatpush.msra.mxu0 0.0
  %63 = vmatpush.msra.mxu0 0.0
  %64 = vmatpush.msra.mxu0 0.0
  %65 = vmatpush.msra.mxu0 0.0
  %66 = vmatpush.msra.mxu0 0.0
  %67 = vmatpush.msra.mxu0 0.0
  %68 = vmatpush.msra.mxu0 0.0
  %69 = vmatpush.msra.mxu0 0.0
  %70 = vmatpush.msra.mxu0 0.0
  %71 = vmatpush.msra.mxu0 0.0
  %72 = vmatpush.msra.mxu0 0.0
  %73 = vmatpush.msra.mxu0 0.0
  %74 = vmatpush.msra.mxu0 0.0
  %75 = vmatpush.msra.mxu0 0.0
  %76 = vmatpush.msra.mxu0 %v32
  %77 = vmatpush.msra.mxu0 %v31
  %78 = vmatmul.f32.gmra.mxu0 %v39
  %v79 = vpop.f32.mrf.mxu0
  %v80 = vadd.f32 %v35, %v79
  %81 = vmatmul.f32.gmra.mxu0 %v42
  %v82 = vpop.f32.mrf.mxu0
  %v83 = vadd.f32 %v35, %v82
  %84 = vmatmul.f32.gmra.mxu0 %v45
  %v85 = vpop.f32.mrf.mxu0
  %v86 = vadd.f32 %v35, %v85
  %87 = vmatmul.f32.gmra.mxu0 %v48
  %v88 = vpop.f32.mrf.mxu0
  %v89 = vadd.f32 %v35, %v88
  %90 = vmatmul.f32.gmra.mxu0 %v51
  %v91 = vpop.f32.mrf.mxu0
  %v92 = vadd.f32 %v35, %v91
  %93 = vmatmul.f32.gmra.mxu0 %v54
  %v94 = vpop.f32.mrf.mxu0
  %v95 = vadd.f32 %v35, %v94
  %96 = vmatmul.f32.gmra.mxu0 %v57
  %v97 = vpop.f32.mrf.mxu0
  %v98 = vadd.f32 %v35, %v97
  %99 = vmatmul.f32.gmra.mxu0 %v60
  %v100 = vpop.f32.mrf.mxu0
  %v101 = vadd.f32 %v35, %v100
  %102 = vdwg.mxu0
  %v103 = vmax.f32 %v80, 0.0
  %v104 = vmax.f32 %v83, 0.0
  %v105 = vmax.f32 %v86, 0.0
  %v106 = vmax.f32 %v89, 0.0
  %v107 = vmax.f32 %v92, 0.0
  %v108 = vmax.f32 %v95, 0.0
  %v109 = vmax.f32 %v98, 0.0
  %v110 = vmax.f32 %v101, 0.0
  %v111 = vld [vmem:[%s2] sm:$0xff]
  %v112 = vld [vmem:[%s2 + $0x8] sm:$0xff]
  %v113 = vld [vmem:[%s2 + $0x10] sm:$0xff]
  %v114 = vld [vmem:[%s2 + $0x18] sm:$0xff]
  %v115 = vld [vmem:[%s2 + $0x20] sm:$0xff]
  %v116 = vld [vmem:[%s2 + $0x28] sm:$0xff]
  %v117 = vld [vmem:[%s2 + $0x30] sm:$0xff]
  %v118 = vld [vmem:[%s2 + $0x38] sm:$0xff]
  %v119 = vld [vmem:[%s2 + $0x40] sm:$0xff]
  %v120 = vld [vmem:[%s2 + $0x48] sm:$0xff]
  %v121 = vld [vmem:[%s2 + $0x50] sm:$0xff]
  %v122 = vld [vmem:[%s2 + $0x58] sm:$0xff]
  %v123 = vld [vmem:[%s2 + $0x60] sm:$0xff]
  %v124 = vld [vmem:[%s2 + $0x68] sm:$0xff]
  %v125 = vld [vmem:[%s2 + $0x70] sm:$0xff]
  %v126 = vld [vmem:[%s2 + $0x78] sm:$0xff]
  %s127 = scalar_lea.vmem %s4, 1
  %v128 = vld [vmem:[%s127] sm:$0x1]
  %v130 = vperm.slane %v128, 0
  %132 = vmatpush.msra.mxu0 %v126
  %133 = vmatpush.msra.mxu0 %v125
  %134 = vmatpush.msra.mxu0 %v124
  %135 = vmatpush.msra.mxu0 %v123
  %136 = vmatpush.msra.mxu0 %v122
  %137 = vmatpush.msra.mxu0 %v121
  %138 = vmatpush.msra.mxu0 %v120
  %139 = vmatpush.msra.mxu0 %v119
  %140 = vmatpush.msra.mxu0 %v118
  %141 = vmatpush.msra.mxu0 %v117
  %142 = vmatpush.msra.mxu0 %v116
  %143 = vmatpush.msra.mxu0 %v115
  %144 = vmatpush.msra.mxu0 %v114
  %145 = vmatpush.msra.mxu0 %v113
  %146 = vmatpush.msra.mxu0 %v112
  %147 = vmatpush.msra.mxu0 %v111
  %148 = vmatmul.f32.gmra.mxu0 %v103
  %v149 = vpop.f32.mrf.mxu0
  %v150 = vadd.f32 %v130, %v149
  %151 = vmatmul.f32.gmra.mxu0 %v104
  %v152 = vpop.f32.mrf.mxu0
  %v153 = vadd.f32 %v130, %v152
  %154 = vmatmul.f32.gmra.mxu0 %v105
  %v155 = vpop.f32.mrf.mxu0
  %v156 = vadd.f32 %v130, %v155
  %157 = vmatmul.f32.gmra.mxu0 %v106
  %v158 = vpop.f32.mrf.mxu0
  %v159 = vadd.f32 %v130, %v158
  %160 = vmatmul.f32.gmra.mxu0 %v107
  %v161 = vpop.f32.mrf.mxu0
  %v162 = vadd.f32 %v130, %v161
  %163 = vmatmul.f32.gmra.mxu0 %v108
  %v164 = vpop.f32.mrf.mxu0
  %v165 = vadd.f32 %v130, %v164
  %166 = vmatmul.f32.gmra.mxu0 %v109
  %v167 = vpop.f32.mrf.mxu0
  %v168 = vadd.f32 %v130, %v167
  %169 = vmatmul.f32.gmra.mxu0 %v110
  %v170 = vpop.f32.mrf.mxu0
  %v171 = vadd.f32 %v130, %v170
  %172 = vdwg.mxu0
  %v173 = vmax.f32 %v150, 0.0
  %v174 = vmax.f32 %v153, 0.0
  %v175 = vmax.f32 %v156, 0.0
  %v176 = vmax.f32 %v159, 0.0
  %v177 = vmax.f32 %v162, 0.0
  %v178 = vmax.f32 %v165, 0.0
  %v179 = vmax.f32 %v168, 0.0
  %v180 = vmax.f32 %v171, 0.0
  %v181 = vld [vmem:[%s3] sm:$0xff]
  %v182 = vld [vmem:[%s3 + $0x8] sm:$0xff]
  %v183 = vld [vmem:[%s3 + $0x10] sm:$0xff]
  %v184 = vld [vmem:[%s3 + $0x18] sm:$0xff]
  %v185 = vld [vmem:[%s3 + $0x20] sm:$0xff]
  %v186 = vld [vmem:[%s3 + $0x28] sm:$0xff]
  %v187 = vld [vmem:[%s3 + $0x30] sm:$0xff]
  %v188 = vld [vmem:[%s3 + $0x38] sm:$0xff]
  %v189 = vld [vmem:[%s3 + $0x40] sm:$0xff]
  %v190 = vld [vmem:[%s3 + $0x48] sm:$0xff]
  %v191 = vld [vmem:[%s3 + $0x50] sm:$0xff]
  %v192 = vld [vmem:[%s3 + $0x58] sm:$0xff]
  %v193 = vld [vmem:[%s3 + $0x60] sm:$0xff]
  %v194 = vld [vmem:[%s3 + $0x68] sm:$0xff]
  %v195 = vld [vmem:[%s3 + $0x70] sm:$0xff]
  %v196 = vld [vmem:[%s3 + $0x78] sm:$0xff]
  %v197 = vld [vmem:[%s5] sm:$0x1]
  %v199 = vperm.slane %v197, 0
  %201 = vmatpush.msra.mxu0 %v196
  %202 = vmatpush.msra.mxu0 %v195
  %203 = vmatpush.msra.mxu0 %v194
  %204 = vmatpush.msra.mxu0 %v193
  %205 = vmatpush.msra.mxu0 %v192
  %206 = vmatpush.msra.mxu0 %v191
  %207 = vmatpush.msra.mxu0 %v190
  %208 = vmatpush.msra.mxu0 %v189
  %209 = vmatpush.msra.mxu0 %v188
  %210 = vmatpush.msra.mxu0 %v187
  %211 = vmatpush.msra.mxu0 %v186
  %212 = vmatpush.msra.mxu0 %v185
  %213 = vmatpush.msra.mxu0 %v184
  %214 = vmatpush.msra.mxu0 %v183
  %215 = vmatpush.msra.mxu0 %v182
  %216 = vmatpush.msra.mxu0 %v181
  %217 = vmatmul.f32.gmra.mxu0 %v173
  %v218 = vpop.f32.mrf.mxu0
  %v219 = vadd.f32 %v199, %v218
  %220 = vmatmul.f32.gmra.mxu0 %v174
  %v221 = vpop.f32.mrf.mxu0
  %v222 = vadd.f32 %v199, %v221
  %223 = vmatmul.f32.gmra.mxu0 %v175
  %v224 = vpop.f32.mrf.mxu0
  %v225 = vadd.f32 %v199, %v224
  %226 = vmatmul.f32.gmra.mxu0 %v176
  %v227 = vpop.f32.mrf.mxu0
  %v228 = vadd.f32 %v199, %v227
  %229 = vmatmul.f32.gmra.mxu0 %v177
  %v230 = vpop.f32.mrf.mxu0
  %v231 = vadd.f32 %v199, %v230
  %232 = vmatmul.f32.gmra.mxu0 %v178
  %v233 = vpop.f32.mrf.mxu0
  %v234 = vadd.f32 %v199, %v233
  %235 = vmatmul.f32.gmra.mxu0 %v179
  %v236 = vpop.f32.mrf.mxu0
  %v237 = vadd.f32 %v199, %v236
  %238 = vmatmul.f32.gmra.mxu0 %v180
  %v239 = vpop.f32.mrf.mxu0
  %v240 = vadd.f32 %v199, %v239
  %241 = vdwg.mxu0
  %vm242 = vcmask 31744
  %243 = vst.msk [vmem:[%s6] sm:$0xff] %vm242, %v219
  %244 = vst.msk [vmem:[%s6 + $0x8] sm:$0xff] %vm242, %v222
  %245 = vst.msk [vmem:[%s6 + $0x10] sm:$0xff] %vm242, %v225
  %246 = vst.msk [vmem:[%s6 + $0x18] sm:$0xff] %vm242, %v228
  %247 = vst.msk [vmem:[%s6 + $0x20] sm:$0xff] %vm242, %v231
  %248 = vst.msk [vmem:[%s6 + $0x28] sm:$0xff] %vm242, %v234
  %249 = vst.msk [vmem:[%s6 + $0x30] sm:$0xff] %vm242, %v237
  %250 = vst.msk [vmem:[%s6 + $0x38] sm:$0xff] %vm242, %v240
  // Predicated region
  $region26: #{tpu_custom_call.1} parent=0 // pred_check
    _
  $region27: #{tpu_custom_call.1} parent=0 // pred_check_branch
    %252 = sbr.rel (0) target = $region29
  $region28: #{tpu_custom_call.1} parent=0 // pred_region
    _
  $region29: #{tpu_custom_call.1} parent=0 // pred_fallthru
    _
  // Predicated region
  $region30: #{tpu_custom_call.1} parent=0 // pred_check
    _
  $region31: #{tpu_custom_call.1} parent=0 // pred_check_branch
    %254 = sbr.rel (0) target = $region33
  $region32: #{tpu_custom_call.1} parent=0 // pred_region
    _
  $region33: #{tpu_custom_call.1} parent=0 // pred_fallthru
    _

</llo_original>
